<compile_context>
chip_gen: v7x
topology: tpu7x:2x2x1
jax: 0.10.0
libtpu: 0.0.40
codegen_flags: <defaults>
</compile_context>

<pallas_src>
import functools

import jax
import jax.numpy as jnp
from jax import lax
from jax.experimental import pallas as pl
from jax.experimental.pallas import tpu as pltpu

EPS = 1e-5
_MIB = 1024 * 1024

# --------------------------------------------------------------------------
# Per-chip VMEM budget
# --------------------------------------------------------------------------
_VMEM_CAP_CACHE = None


def _vmem_capacity_bytes():
    """Physical VMEM per core; conservative (v7x-sized) fallback if unqueryable."""
    global _VMEM_CAP_CACHE
    if _VMEM_CAP_CACHE is None:
        cap = None
        try:
            info = pltpu.get_tpu_info()
            for attr in ("vmem_capacity_bytes", "vmem_bytes", "vmem_size_bytes"):
                v = getattr(info, attr, None)
                if isinstance(v, int) and v > 0:
                    cap = int(v)
                    break
        except Exception:
            cap = None
        if cap is None:
            cap = 64 * _MIB  # safe lower bound across v5e / v6e / v7x
        _VMEM_CAP_CACHE = cap
    return _VMEM_CAP_CACHE


def _vmem_limit_bytes():
    # ~75% of physical, capped at 96 MiB: v5e/v6e -> 96 MiB, v7x/fallback -> 48 MiB.
    return min(_vmem_capacity_bytes() * 3 // 4, 96 * _MIB)


# --------------------------------------------------------------------------
# VMEM-resident single-read kernel (fast path)
# --------------------------------------------------------------------------
def _resident_kernel(x_ref, w1_ref, g1_ref, b1_ref, w2_ref, g2_ref, b2_ref,
                     o_ref, h_ref, sum_ref, sq_ref, *, n_batch, n_len,
                     compute_dtype):
    inv_r = jnp.float32(1.0 / (n_batch * n_len))
    ones = jnp.ones((n_len, 1), jnp.float32)

    def cast(v):
        return v if v.dtype == compute_dtype else v.astype(compute_dtype)

    # ---- conv1 + BN1 batch statistics (x read once, from VMEM) ----
    sum_ref[...] = jnp.zeros_like(sum_ref)
    sq_ref[...] = jnp.zeros_like(sq_ref)

    @pl.loop(0, n_batch)
    def _(n):
        h = jnp.dot(w1_ref[...], cast(x_ref[n]),
                    preferred_element_type=jnp.float32)        # (C, L) f32
        h_ref[n] = h
        sum_ref[...] += jnp.dot(h, ones, preferred_element_type=jnp.float32)
        sq_ref[...] += jnp.dot(h * h, ones, preferred_element_type=jnp.float32)

    mean1 = sum_ref[...] * inv_r
    var1 = jnp.maximum(sq_ref[...] * inv_r - mean1 * mean1, 0.0)
    scale1 = g1_ref[...] * lax.rsqrt(var1 + EPS)
    bias1 = b1_ref[...] - mean1 * scale1

    # ---- folded BN1 + ReLU + conv2 + BN2 batch statistics ----
    sum_ref[...] = jnp.zeros_like(sum_ref)
    sq_ref[...] = jnp.zeros_like(sq_ref)

    @pl.loop(0, n_batch)
    def _(n):
        a = jnp.maximum(h_ref[n] * scale1 + bias1, 0.0)
        h2 = jnp.dot(w2_ref[...], cast(a), preferred_element_type=jnp.float32)
        o_ref[n] = h2.astype(o_ref.dtype)
        sum_ref[...] += jnp.dot(h2, ones, preferred_element_type=jnp.float32)
        sq_ref[...] += jnp.dot(h2 * h2, ones, preferred_element_type=jnp.float32)

    mean2 = sum_ref[...] * inv_r
    var2 = jnp.maximum(sq_ref[...] * inv_r - mean2 * mean2, 0.0)
    scale2 = g2_ref[...] * lax.rsqrt(var2 + EPS)
    bias2 = b2_ref[...] - mean2 * scale2

    # ---- folded BN2 + residual + ReLU ----
    @pl.loop(0, n_batch)
    def _(n):
        h2 = o_ref[n].astype(jnp.float32)
        out = jnp.maximum(h2 * scale2 + bias2 + x_ref[n].astype(jnp.float32), 0.0)
        o_ref[n] = out.astype(o_ref.dtype)


def _resident_forward(x, w1m, w2m, g1, b1, g2, b2, compute_dtype, vmem_limit):
    N, C, L = x.shape
    kern = functools.partial(_resident_kernel, n_batch=N, n_len=L,
                             compute_dtype=compute_dtype)
    vmem_spec = pl.BlockSpec(memory_space=pltpu.MemorySpace.VMEM)
    return pl.pallas_call(
        kern,
        out_shape=jax.ShapeDtypeStruct((N, C, L), x.dtype),
        in_specs=[vmem_spec] * 7,
        out_specs=vmem_spec,
        scratch_shapes=[pltpu.VMEM((N, C, L), jnp.float32),   # conv1 activations
                        pltpu.VMEM((C, 1), jnp.float32),      # stat sum
                        pltpu.VMEM((C, 1), jnp.float32)],     # stat sum-of-squares
        compiler_params=pltpu.CompilerParams(vmem_limit_bytes=vmem_limit),
    )(x, w1m, g1, b1, w2m, g2, b2)


# --------------------------------------------------------------------------
# Tiled streaming kernels (3 passes)
# --------------------------------------------------------------------------
def _stats1_kernel(x_ref, w1_ref, sum_ref, sq_ref, *, compute_dtype):
    """Pass 1: h1 = W1 @ x per tile; accumulate per-batch partial sum / sumsq."""
    @pl.when(pl.program_id(1) == 0)
    def _():
        sum_ref[...] = jnp.zeros_like(sum_ref)
        sq_ref[...] = jnp.zeros_like(sq_ref)

    x = x_ref[0]                                              # (C, tL)
    if x.dtype != compute_dtype:
        x = x.astype(compute_dtype)
    h = jnp.dot(w1_ref[...], x, preferred_element_type=jnp.float32)
    ones = jnp.ones((h.shape[-1], 1), jnp.float32)            # MXU-based reduce
    sum_ref[0] += jnp.dot(h, ones, preferred_element_type=jnp.float32)
    sq_ref[0] += jnp.dot(h * h, ones, preferred_element_type=jnp.float32)


def _stats2_kernel(x_ref, w1_ref, s1_ref, b1_ref, w2_ref, sum_ref, sq_ref, *,
                   compute_dtype, l_valid, l_padded):
    """Pass 2: recompute conv1, folded BN1 + ReLU, conv2; accumulate BN2 stats."""
    @pl.when(pl.program_id(1) == 0)
    def _():
        sum_ref[...] = jnp.zeros_like(sum_ref)
        sq_ref[...] = jnp.zeros_like(sq_ref)

    x = x_ref[0]
    if x.dtype != compute_dtype:
        x = x.astype(compute_dtype)
    h = jnp.dot(w1_ref[...], x, preferred_element_type=jnp.float32)
    a = jnp.maximum(h * s1_ref[...] + b1_ref[...], 0.0)       # BN1 (folded) + ReLU
    if a.dtype != compute_dtype:
        a = a.astype(compute_dtype)
    h2 = jnp.dot(w2_ref[...], a, preferred_element_type=jnp.float32)
    tile_l = h2.shape[-1]
    if l_valid != l_padded:
        # Zero the padded columns so they do not contaminate the BN2 statistics.
        col = pl.program_id(1) * tile_l + lax.broadcasted_iota(
            jnp.int32, (1, tile_l), 1)
        h2 = jnp.where(col < l_valid, h2, 0.0)
    ones = jnp.ones((tile_l, 1), jnp.float32)
    sum_ref[0] += jnp.dot(h2, ones, preferred_element_type=jnp.float32)
    sq_ref[0] += jnp.dot(h2 * h2, ones, preferred_element_type=jnp.float32)


def _apply_kernel(x_ref, w1_ref, s1_ref, b1_ref, w2_ref, s2_ref, b2_ref, o_ref, *,
                  compute_dtype):
    """Pass 3: recompute, folded BN2, residual add, ReLU -> output tile."""
    x = x_ref[0]
    xc = x if x.dtype == compute_dtype else x.astype(compute_dtype)
    h = jnp.dot(w1_ref[...], xc, preferred_element_type=jnp.float32)
    a = jnp.maximum(h * s1_ref[...] + b1_ref[...], 0.0)
    ac = a if a.dtype == compute_dtype else a.astype(compute_dtype)
    h2 = jnp.dot(w2_ref[...], ac, preferred_element_type=jnp.float32)
    out = jnp.maximum(h2 * s2_ref[...] + b2_ref[...] + x.astype(jnp.float32), 0.0)
    o_ref[0] = out.astype(o_ref.dtype)


def _pick_tile_l(l_padded, c, vmem_limit, target_bytes=4 * _MIB):
    """Largest multiple-of-128 L tile dividing l_padded, ~target_bytes of f32,
    keeping 2x(x tile) + 2x(out tile) + weights inside the VMEM limit."""
    assert l_padded % 128 == 0
    budget = max(128 * c * 4, (vmem_limit - 8 * c * c * 4 - 4 * _MIB) // 5)
    tl = min(l_padded, max(128, min(target_bytes, budget) // (4 * c) // 128 * 128))
    while l_padded % tl != 0:
        tl -= 128
    return tl


def _tiled_forward(x, w1m, w2m, g1, b1, g2, b2, tile_l, compute_dtype, vmem_limit):
    N, C, L = x.shape
    L_pad = ((L + 127) // 128) * 128
    if L_pad != L:
        # Zero padding keeps pass-1 statistics exact (conv of zero columns is
        # zero); pass 2 masks the padded columns before accumulating its stats.
        x_in = jnp.pad(x, ((0, 0), (0, 0), (0, L_pad - L)))
    else:
        x_in = x

    if tile_l is None:
        tile_l = _pick_tile_l(L_pad, C, vmem_limit)
    assert L_pad % tile_l == 0 and (tile_l % 128 == 0 or tile_l == L_pad)

    grid = (N, L_pad // tile_l)
    inv_r = jnp.float32(1.0 / (N * L))

    x_spec = pl.BlockSpec((1, C, tile_l), lambda n, t: (n, 0, t))
    w_spec = pl.BlockSpec((C, C), lambda n, t: (0, 0))          # VMEM-resident weights
    v_spec = pl.BlockSpec((C, 1), lambda n, t: (0, 0))          # resident scale/bias
    stat_spec = pl.BlockSpec((1, C, 1), lambda n, t: (n, 0, 0))  # per-batch partials

    cp_stats = pltpu.CompilerParams(
        dimension_semantics=("parallel", "arbitrary"),           # N across cores (v7x)
        vmem_limit_bytes=vmem_limit)
    cp_apply = pltpu.CompilerParams(
        dimension_semantics=("parallel", "parallel"),
        vmem_limit_bytes=vmem_limit)

    stat_out = (jax.ShapeDtypeStruct((N, C, 1), jnp.float32),
                jax.ShapeDtypeStruct((N, C, 1), jnp.float32))

    # ---- pass 1: BN1 batch statistics ----
    p1_sum, p1_sq = pl.pallas_call(
        functools.partial(_stats1_kernel, compute_dtype=compute_dtype),
        out_shape=stat_out, grid=grid,
        in_specs=[x_spec, w_spec],
        out_specs=(stat_spec, stat_spec),
        compiler_params=cp_stats,
    )(x_in, w1m)

    s1_sum = jnp.sum(p1_sum, axis=0)       # tiny XLA reduce over megacore partials
    s1_sq = jnp.sum(p1_sq, axis=0)
    mean1 = s1_sum * inv_r
    var1 = jnp.maximum(s1_sq * inv_r - mean1 * mean1, 0.0)      # biased var, clamped
    scale1 = g1 * lax.rsqrt(var1 + EPS)
    bias1 = b1 - mean1 * scale1

    # ---- pass 2: BN2 batch statistics ----
    p2_sum, p2_sq = pl.pallas_call(
        functools.partial(_stats2_kernel, compute_dtype=compute_dtype,
                          l_valid=L, l_padded=L_pad),
        out_shape=stat_out, grid=grid,
        in_specs=[x_spec, w_spec, v_spec, v_spec, w_spec],
        out_specs=(stat_spec, stat_spec),
        compiler_params=cp_stats,
    )(x_in, w1m, scale1, bias1, w2m)

    mean2 = jnp.sum(p2_sum, axis=0) * inv_r
    var2 = jnp.maximum(jnp.sum(p2_sq, axis=0) * inv_r - mean2 * mean2, 0.0)
    scale2 = g2 * lax.rsqrt(var2 + EPS)
    bias2 = b2 - mean2 * scale2

    # ---- pass 3: apply BN1/ReLU/conv2/BN2 + residual + ReLU ----
    out = pl.pallas_call(
        functools.partial(_apply_kernel, compute_dtype=compute_dtype),
        out_shape=jax.ShapeDtypeStruct((N, C, L_pad), x.dtype),
        grid=grid,
        in_specs=[x_spec, w_spec, v_spec, v_spec, w_spec, v_spec, v_spec],
        out_specs=x_spec,
        compiler_params=cp_apply,
    )(x_in, w1m, scale1, bias1, w2m, scale2, bias2)

    if L_pad != L:
        out = out[:, :, :L]
    return out


# --------------------------------------------------------------------------
# Public wrapper
# --------------------------------------------------------------------------
def basic_block_forward(x_ncl, w1, g1, b1, w2, g2, b2, *,
                        tile_l=None, compute_dtype=None, use_resident=None):
    """x_ncl: (N, C, L) float32. w1/w2: (C, C, 1) PyTorch Conv1d weights."""
    N, C, L = x_ncl.shape
    if compute_dtype is None:
        compute_dtype = jnp.float32   # bf16 operands only help once MXU-bound (large C)
    compute_dtype = jnp.dtype(compute_dtype)

    # Pre-cast weights once (review: hoist the per-tile VPU casts out of kernels).
    w1m = w1[:, :, 0].astype(compute_dtype)
    w2m = w2[:, :, 0].astype(compute_dtype)
    g1c = g1.reshape(C, 1).astype(jnp.float32)
    b1c = b1.reshape(C, 1).astype(jnp.float32)
    g2c = g2.reshape(C, 1).astype(jnp.float32)
    b2c = b2.reshape(C, 1).astype(jnp.float32)

    vmem_limit = _vmem_limit_bytes()

    # VMEM-resident single-read fast path: x + out + f32 scratch + weights + margin.
    data_bytes = N * C * L * 4
    weight_bytes = 2 * C * C * w1m.dtype.itemsize
    resident_bytes = 3 * data_bytes + weight_bytes + 2 * _MIB
    if use_resident is None:
        use_resident = resident_bytes <= vmem_limit - 4 * _MIB

    if use_resident:
        return _resident_forward(x_ncl, w1m, w2m, g1c, b1c, g2c, b2c,
                                 compute_dtype, vmem_limit)
    return _tiled_forward(x_ncl, w1m, w2m, g1c, b1c, g2c, b2c,
                          tile_l, compute_dtype, vmem_limit)


# --------------------------------------------------------------------------
# Pure-JAX reference (matches PyTorch training-mode BasicBlock forward)
# --------------------------------------------------------------------------
def basic_block_reference(x_ncl, w1, g1, b1, w2, g2, b2):
    def conv1x1(x, w):   # x: (N, C, L), w: (Cout, Cin, 1)
        return jnp.einsum("ncl,oc->nol", x, w[:, :, 0])

    def bn(x, g, b):     # batch stats over (N, L), biased variance
        mean = jnp.mean(x, axis=(0, 2), keepdims=True)
        var = jnp.mean((x - mean) ** 2, axis=(0, 2), keepdims=True)
        return (x - mean) * lax.rsqrt(var + EPS) * g[None, :, None] + b[None, :, None]

    out = jnp.maximum(bn(conv1x1(x_ncl, w1), g1, b1), 0.0)
    out = bn(conv1x1(out, w2), g2, b2)
    return jnp.maximum(out + x_ncl, 0.0)


if __name__ == "__main__":
    # inplanes == planes so the residual add works with downsample=None.
    N, C, L = 2, 8, 256
    key = jax.random.PRNGKey(0)
    kx, k1, k2, kg1, kb1, kg2, kb2 = jax.random.split(key, 7)

    x = jax.random.normal(kx, (N, C, L), dtype=jnp.float32)
    w1 = jax.random.normal(k1, (C, C, 1), dtype=jnp.float32) * 0.1    # conv1 weight
    w2 = jax.random.normal(k2, (C, C, 1), dtype=jnp.float32) * 0.1    # conv2 weight
    g1 = 1.0 + 0.1 * jax.random.normal(kg1, (C,), dtype=jnp.float32)  # bn1 gamma
    b1 = 0.1 * jax.random.normal(kb1, (C,), dtype=jnp.float32)        # bn1 beta
    g2 = 1.0 + 0.1 * jax.random.normal(kg2, (C,), dtype=jnp.float32)  # bn2 gamma
    b2 = 0.1 * jax.random.normal(kb2, (C,), dtype=jnp.float32)        # bn2 beta

    ref = basic_block_reference(x, w1, g1, b1, w2, g2, b2)

    # A) auto path: small input -> VMEM-resident single-read kernel, f32.
    fwd_a = jax.jit(basic_block_forward)
    out_a = jax.block_until_ready(fwd_a(x, w1, g1, b1, w2, g2, b2))
    assert out_a.shape == (N, C, L)
    assert jnp.allclose(out_a, ref, atol=1e-4, rtol=1e-4), "resident f32 mismatch"

    # B) forced tiled 3-pass path, f32, multiple L tiles + megacore stat partials.
    fwd_b = jax.jit(functools.partial(basic_block_forward, tile_l=128,
                                      use_resident=False))
    out_b = jax.block_until_ready(fwd_b(x, w1, g1, b1, w2, g2, b2))
    assert jnp.allclose(out_b, ref, atol=1e-4, rtol=1e-4), "tiled f32 mismatch"

    # C) L not a multiple of 128 -> wrapper pads x, pass 2 masks padded columns.
    L2 = 200
    x2 = jax.random.normal(kx, (N, C, L2), dtype=jnp.float32)
    ref2 = basic_block_reference(x2, w1, g1, b1, w2, g2, b2)
    fwd_c = jax.jit(functools.partial(basic_block_forward, use_resident=False))
    out_c = jax.block_until_ready(fwd_c(x2, w1, g1, b1, w2, g2, b2))
    assert out_c.shape == (N, C, L2)
    assert jnp.allclose(out_c, ref2, atol=1e-4, rtol=1e-4), "padded tiled f32 mismatch"

    # D) bf16 matmul-operand path (f32 accumulation + f32 BN/elementwise), tiled.
    fwd_d = jax.jit(functools.partial(basic_block_forward, tile_l=128,
                                      compute_dtype=jnp.bfloat16,
                                      use_resident=False))
    out_d = jax.block_until_ready(fwd_d(x, w1, g1, b1, w2, g2, b2))
    assert jnp.allclose(out_d, ref, atol=5e-2, rtol=5e-2), "tiled bf16 mismatch"

    print("KERNEL_OK")
</pallas_src>

<mosaic_0001>
module attributes {stable_mosaic.version = 11 : i64} {
  func.func @_resident_kernel(%arg0: memref<2x8x256xf32, #tpu.memory_space<vmem>>, %arg1: memref<8x8xf32, #tpu.memory_space<vmem>>, %arg2: memref<8x1xf32, #tpu.memory_space<vmem>>, %arg3: memref<8x1xf32, #tpu.memory_space<vmem>>, %arg4: memref<8x8xf32, #tpu.memory_space<vmem>>, %arg5: memref<8x1xf32, #tpu.memory_space<vmem>>, %arg6: memref<8x1xf32, #tpu.memory_space<vmem>>, %arg7: memref<2x8x256xf32, #tpu.memory_space<vmem>>, %arg8: memref<2x8x256xf32, #tpu.memory_space<vmem>>, %arg9: memref<8x1xf32, #tpu.memory_space<vmem>>, %arg10: memref<8x1xf32, #tpu.memory_space<vmem>>) attributes {dimension_semantics = [], scalar_prefetch = 0 : i64, scratch_operands = 3 : i64, tpu.core_type = #tpu.core_type<tc>} {
    %cst = arith.constant 1.000000e+00 : f32
    %0 = vector.broadcast %cst : f32 to vector<256x1xf32>
    %cst_0 = arith.constant 0.000000e+00 : f32
    %1 = vector.broadcast %cst_0 : f32 to vector<8x1xf32>
    %c0 = arith.constant 0 : index
    %c0_1 = arith.constant 0 : index
    %2 = vector.load %arg9[%c0, %c0_1] : memref<8x1xf32, #tpu.memory_space<vmem>>, vector<8x1xf32>
    tpu.vector_store %arg9[%c0, %c0_1], %1 {strides = array<i32>} : memref<8x1xf32, #tpu.memory_space<vmem>>, vector<8x1xf32>,
    %cst_2 = arith.constant 0.000000e+00 : f32
    %3 = vector.broadcast %cst_2 : f32 to vector<8x1xf32>
    %c0_3 = arith.constant 0 : index
    %c0_4 = arith.constant 0 : index
    %4 = vector.load %arg10[%c0_3, %c0_4] : memref<8x1xf32, #tpu.memory_space<vmem>>, vector<8x1xf32>
    tpu.vector_store %arg10[%c0_3, %c0_4], %3 {strides = array<i32>} : memref<8x1xf32, #tpu.memory_space<vmem>>, vector<8x1xf32>,
    %c0_i32 = arith.constant 0 : i32
    %c2_i32 = arith.constant 2 : i32
    %5 = arith.addi %c0_i32, %c2_i32 : i32
    %c1_i32 = arith.constant 1 : i32
    scf.for %arg11 = %c0_i32 to %5 step %c1_i32  : i32 {
      %c1_i32_44 = arith.constant 1 : i32
      %48 = arith.muli %arg11, %c1_i32_44 : i32
      %c0_i32_45 = arith.constant 0 : i32
      %49 = arith.addi %c0_i32_45, %48 : i32
      %c0_46 = arith.constant 0 : index
      %c0_47 = arith.constant 0 : index
      %50 = vector.load %arg1[%c0_46, %c0_47] : memref<8x8xf32, #tpu.memory_space<vmem>>, vector<8x8xf32>
      %51 = arith.index_cast %49 : i32 to index
      %c0_48 = arith.constant 0 : index
      %c0_49 = arith.constant 0 : index
      %52 = vector.load %arg0[%51, %c0_48, %c0_49] : memref<2x8x256xf32, #tpu.memory_space<vmem>>, vector<1x8x256xf32>
      %53 = vector.shape_cast %52 : vector<1x8x256xf32> to vector<8x256xf32>
      %cst_50 = arith.constant dense<0.000000e+00> : vector<8x256xf32>
      %54 = tpu.matmul %50, %53, %cst_50 {dimension_numbers = #tpu.dot_dimension_numbers<[1], [0], [0], [1], [0, 0, 1, 1], [], []>} : vector<8x8xf32>, vector<8x256xf32>, vector<8x256xf32> -> vector<8x256xf32>
      %55 = arith.index_cast %49 : i32 to index
      %c0_51 = arith.constant 0 : index
      %c0_52 = arith.constant 0 : index
      %56 = vector.load %arg8[%55, %c0_51, %c0_52] : memref<2x8x256xf32, #tpu.memory_space<vmem>>, vector<1x8x256xf32>
      %57 = vector.shape_cast %56 : vector<1x8x256xf32> to vector<8x256xf32>
      %58 = vector.shape_cast %54 : vector<8x256xf32> to vector<1x8x256xf32>
      tpu.vector_store %arg8[%55, %c0_51, %c0_52], %58 {strides = array<i32>} : memref<2x8x256xf32, #tpu.memory_space<vmem>>, vector<1x8x256xf32>,
      %c0_53 = arith.constant 0 : index
      %c0_54 = arith.constant 0 : index
      %59 = vector.load %arg9[%c0_53, %c0_54] : memref<8x1xf32, #tpu.memory_space<vmem>>, vector<8x1xf32>
      %cst_55 = arith.constant dense<0.000000e+00> : vector<8x1xf32>
      %60 = tpu.matmul %54, %0, %cst_55 {dimension_numbers = #tpu.dot_dimension_numbers<[1], [0], [0], [1], [0, 0, 1, 1], [], []>} : vector<8x256xf32>, vector<256x1xf32>, vector<8x1xf32> -> vector<8x1xf32>
      %61 = arith.addf %59, %60 : vector<8x1xf32>
      %c0_56 = arith.constant 0 : index
      %c0_57 = arith.constant 0 : index
      %62 = vector.load %arg9[%c0_56, %c0_57] : memref<8x1xf32, #tpu.memory_space<vmem>>, vector<8x1xf32>
      tpu.vector_store %arg9[%c0_56, %c0_57], %61 {strides = array<i32>} : memref<8x1xf32, #tpu.memory_space<vmem>>, vector<8x1xf32>,
      %c0_58 = arith.constant 0 : index
      %c0_59 = arith.constant 0 : index
      %63 = vector.load %arg10[%c0_58, %c0_59] : memref<8x1xf32, #tpu.memory_space<vmem>>, vector<8x1xf32>
      %64 = arith.mulf %54, %54 : vector<8x256xf32>
      %cst_60 = arith.constant dense<0.000000e+00> : vector<8x1xf32>
      %65 = tpu.matmul %64, %0, %cst_60 {dimension_numbers = #tpu.dot_dimension_numbers<[1], [0], [0], [1], [0, 0, 1, 1], [], []>} : vector<8x256xf32>, vector<256x1xf32>, vector<8x1xf32> -> vector<8x1xf32>
      %66 = arith.addf %63, %65 : vector<8x1xf32>
      %c0_61 = arith.constant 0 : index
      %c0_62 = arith.constant 0 : index
      %67 = vector.load %arg10[%c0_61, %c0_62] : memref<8x1xf32, #tpu.memory_space<vmem>>, vector<8x1xf32>
      tpu.vector_store %arg10[%c0_61, %c0_62], %66 {strides = array<i32>} : memref<8x1xf32, #tpu.memory_space<vmem>>, vector<8x1xf32>,
    }
    %c2_i32_5 = arith.constant 2 : i32
    %c0_6 = arith.constant 0 : index
    %c0_7 = arith.constant 0 : index
    %6 = vector.load %arg9[%c0_6, %c0_7] : memref<8x1xf32, #tpu.memory_space<vmem>>, vector<8x1xf32>
    %cst_8 = arith.constant 0.001953125 : f32
    %7 = vector.broadcast %cst_8 : f32 to vector<8x1xf32>
    %8 = arith.mulf %6, %7 : vector<8x1xf32>
    %c0_9 = arith.constant 0 : index
    %c0_10 = arith.constant 0 : index
    %9 = vector.load %arg10[%c0_9, %c0_10] : memref<8x1xf32, #tpu.memory_space<vmem>>, vector<8x1xf32>
    %cst_11 = arith.constant 0.001953125 : f32
    %10 = vector.broadcast %cst_11 : f32 to vector<8x1xf32>
    %11 = arith.mulf %9, %10 : vector<8x1xf32>
    %12 = arith.mulf %8, %8 : vector<8x1xf32>
    %13 = arith.subf %11, %12 : vector<8x1xf32>
    %cst_12 = arith.constant 0.000000e+00 : f32
    %14 = vector.broadcast %cst_12 : f32 to vector<8x1xf32>
    %15 = arith.maximumf %13, %14 : vector<8x1xf32>
    %c0_13 = arith.constant 0 : index
    %c0_14 = arith.constant 0 : index
    %16 = vector.load %arg2[%c0_13, %c0_14] : memref<8x1xf32, #tpu.memory_space<vmem>>, vector<8x1xf32>
    %cst_15 = arith.constant 9.99999974E-6 : f32
    %17 = vector.broadcast %cst_15 : f32 to vector<8x1xf32>
    %18 = arith.addf %15, %17 : vector<8x1xf32>
    %19 = math.rsqrt %18 : vector<8x1xf32>
    %20 = arith.mulf %16, %19 : vector<8x1xf32>
    %c0_16 = arith.constant 0 : index
    %c0_17 = arith.constant 0 : index
    %21 = vector.load %arg3[%c0_16, %c0_17] : memref<8x1xf32, #tpu.memory_space<vmem>>, vector<8x1xf32>
    %22 = arith.mulf %8, %20 : vector<8x1xf32>
    %23 = arith.subf %21, %22 : vector<8x1xf32>
    %cst_18 = arith.constant 0.000000e+00 : f32
    %24 = vector.broadcast %cst_18 : f32 to vector<8x1xf32>
    %c0_19 = arith.constant 0 : index
    %c0_20 = arith.constant 0 : index
    %25 = vector.load %arg9[%c0_19, %c0_20] : memref<8x1xf32, #tpu.memory_space<vmem>>, vector<8x1xf32>
    tpu.vector_store %arg9[%c0_19, %c0_20], %24 {strides = array<i32>} : memref<8x1xf32, #tpu.memory_space<vmem>>, vector<8x1xf32>,
    %cst_21 = arith.constant 0.000000e+00 : f32
    %26 = vector.broadcast %cst_21 : f32 to vector<8x1xf32>
    %c0_22 = arith.constant 0 : index
    %c0_23 = arith.constant 0 : index
    %27 = vector.load %arg10[%c0_22, %c0_23] : memref<8x1xf32, #tpu.memory_space<vmem>>, vector<8x1xf32>
    tpu.vector_store %arg10[%c0_22, %c0_23], %26 {strides = array<i32>} : memref<8x1xf32, #tpu.memory_space<vmem>>, vector<8x1xf32>,
    %c0_i32_24 = arith.constant 0 : i32
    %c2_i32_25 = arith.constant 2 : i32
    %28 = arith.addi %c0_i32_24, %c2_i32_25 : i32
    %c1_i32_26 = arith.constant 1 : i32
    scf.for %arg11 = %c0_i32_24 to %28 step %c1_i32_26  : i32 {
      %c1_i32_44 = arith.constant 1 : i32
      %48 = arith.muli %arg11, %c1_i32_44 : i32
      %c0_i32_45 = arith.constant 0 : i32
      %49 = arith.addi %c0_i32_45, %48 : i32
      %50 = arith.index_cast %49 : i32 to index
      %c0_46 = arith.constant 0 : index
      %c0_47 = arith.constant 0 : index
      %51 = vector.load %arg8[%50, %c0_46, %c0_47] : memref<2x8x256xf32, #tpu.memory_space<vmem>>, vector<1x8x256xf32>
      %52 = vector.shape_cast %51 : vector<1x8x256xf32> to vector<8x256xf32>
      %53 = vector.broadcast %20 : vector<8x1xf32> to vector<8x256xf32>
      %54 = arith.mulf %52, %53 : vector<8x256xf32>
      %55 = vector.broadcast %23 : vector<8x1xf32> to vector<8x256xf32>
      %56 = arith.addf %54, %55 : vector<8x256xf32>
      %cst_48 = arith.constant 0.000000e+00 : f32
      %57 = vector.broadcast %cst_48 : f32 to vector<8x256xf32>
      %58 = arith.maximumf %56, %57 : vector<8x256xf32>
      %c0_49 = arith.constant 0 : index
      %c0_50 = arith.constant 0 : index
      %59 = vector.load %arg4[%c0_49, %c0_50] : memref<8x8xf32, #tpu.memory_space<vmem>>, vector<8x8xf32>
      %cst_51 = arith.constant dense<0.000000e+00> : vector<8x256xf32>
      %60 = tpu.matmul %59, %58, %cst_51 {dimension_numbers = #tpu.dot_dimension_numbers<[1], [0], [0], [1], [0, 0, 1, 1], [], []>} : vector<8x8xf32>, vector<8x256xf32>, vector<8x256xf32> -> vector<8x256xf32>
      %61 = arith.index_cast %49 : i32 to index
      %c0_52 = arith.constant 0 : index
      %c0_53 = arith.constant 0 : index
      %62 = vector.load %arg7[%61, %c0_52, %c0_53] : memref<2x8x256xf32, #tpu.memory_space<vmem>>, vector<1x8x256xf32>
      %63 = vector.shape_cast %62 : vector<1x8x256xf32> to vector<8x256xf32>
      %64 = vector.shape_cast %60 : vector<8x256xf32> to vector<1x8x256xf32>
      tpu.vector_store %arg7[%61, %c0_52, %c0_53], %64 {strides = array<i32>} : memref<2x8x256xf32, #tpu.memory_space<vmem>>, vector<1x8x256xf32>,
      %c0_54 = arith.constant 0 : index
      %c0_55 = arith.constant 0 : index
      %65 = vector.load %arg9[%c0_54, %c0_55] : memref<8x1xf32, #tpu.memory_space<vmem>>, vector<8x1xf32>
      %cst_56 = arith.constant dense<0.000000e+00> : vector<8x1xf32>
      %66 = tpu.matmul %60, %0, %cst_56 {dimension_numbers = #tpu.dot_dimension_numbers<[1], [0], [0], [1], [0, 0, 1, 1], [], []>} : vector<8x256xf32>, vector<256x1xf32>, vector<8x1xf32> -> vector<8x1xf32>
      %67 = arith.addf %65, %66 : vector<8x1xf32>
      %c0_57 = arith.constant 0 : index
      %c0_58 = arith.constant 0 : index
      %68 = vector.load %arg9[%c0_57, %c0_58] : memref<8x1xf32, #tpu.memory_space<vmem>>, vector<8x1xf32>
      tpu.vector_store %arg9[%c0_57, %c0_58], %67 {strides = array<i32>} : memref<8x1xf32, #tpu.memory_space<vmem>>, vector<8x1xf32>,
      %c0_59 = arith.constant 0 : index
      %c0_60 = arith.constant 0 : index
      %69 = vector.load %arg10[%c0_59, %c0_60] : memref<8x1xf32, #tpu.memory_space<vmem>>, vector<8x1xf32>
      %70 = arith.mulf %60, %60 : vector<8x256xf32>
      %cst_61 = arith.constant dense<0.000000e+00> : vector<8x1xf32>
      %71 = tpu.matmul %70, %0, %cst_61 {dimension_numbers = #tpu.dot_dimension_numbers<[1], [0], [0], [1], [0, 0, 1, 1], [], []>} : vector<8x256xf32>, vector<256x1xf32>, vector<8x1xf32> -> vector<8x1xf32>
      %72 = arith.addf %69, %71 : vector<8x1xf32>
      %c0_62 = arith.constant 0 : index
      %c0_63 = arith.constant 0 : index
      %73 = vector.load %arg10[%c0_62, %c0_63] : memref<8x1xf32, #tpu.memory_space<vmem>>, vector<8x1xf32>
      tpu.vector_store %arg10[%c0_62, %c0_63], %72 {strides = array<i32>} : memref<8x1xf32, #tpu.memory_space<vmem>>, vector<8x1xf32>,
    }
    %c2_i32_27 = arith.constant 2 : i32
    %c0_28 = arith.constant 0 : index
    %c0_29 = arith.constant 0 : index
    %29 = vector.load %arg9[%c0_28, %c0_29] : memref<8x1xf32, #tpu.memory_space<vmem>>, vector<8x1xf32>
    %cst_30 = arith.constant 0.001953125 : f32
    %30 = vector.broadcast %cst_30 : f32 to vector<8x1xf32>
    %31 = arith.mulf %29, %30 : vector<8x1xf32>
    %c0_31 = arith.constant 0 : index
    %c0_32 = arith.constant 0 : index
    %32 = vector.load %arg10[%c0_31, %c0_32] : memref<8x1xf32, #tpu.memory_space<vmem>>, vector<8x1xf32>
    %cst_33 = arith.constant 0.001953125 : f32
    %33 = vector.broadcast %cst_33 : f32 to vector<8x1xf32>
    %34 = arith.mulf %32, %33 : vector<8x1xf32>
    %35 = arith.mulf %31, %31 : vector<8x1xf32>
    %36 = arith.subf %34, %35 : vector<8x1xf32>
    %cst_34 = arith.constant 0.000000e+00 : f32
    %37 = vector.broadcast %cst_34 : f32 to vector<8x1xf32>
    %38 = arith.maximumf %36, %37 : vector<8x1xf32>
    %c0_35 = arith.constant 0 : index
    %c0_36 = arith.constant 0 : index
    %39 = vector.load %arg5[%c0_35, %c0_36] : memref<8x1xf32, #tpu.memory_space<vmem>>, vector<8x1xf32>
    %cst_37 = arith.constant 9.99999974E-6 : f32
    %40 = vector.broadcast %cst_37 : f32 to vector<8x1xf32>
    %41 = arith.addf %38, %40 : vector<8x1xf32>
    %42 = math.rsqrt %41 : vector<8x1xf32>
    %43 = arith.mulf %39, %42 : vector<8x1xf32>
    %c0_38 = arith.constant 0 : index
    %c0_39 = arith.constant 0 : index
    %44 = vector.load %arg6[%c0_38, %c0_39] : memref<8x1xf32, #tpu.memory_space<vmem>>, vector<8x1xf32>
    %45 = arith.mulf %31, %43 : vector<8x1xf32>
    %46 = arith.subf %44, %45 : vector<8x1xf32>
    %c0_i32_40 = arith.constant 0 : i32
    %c2_i32_41 = arith.constant 2 : i32
    %47 = arith.addi %c0_i32_40, %c2_i32_41 : i32
    %c1_i32_42 = arith.constant 1 : i32
    scf.for %arg11 = %c0_i32_40 to %47 step %c1_i32_42  : i32 {
      %c1_i32_44 = arith.constant 1 : i32
      %48 = arith.muli %arg11, %c1_i32_44 : i32
      %c0_i32_45 = arith.constant 0 : i32
      %49 = arith.addi %c0_i32_45, %48 : i32
      %50 = arith.index_cast %49 : i32 to index
      %c0_46 = arith.constant 0 : index
      %c0_47 = arith.constant 0 : index
      %51 = vector.load %arg7[%50, %c0_46, %c0_47] : memref<2x8x256xf32, #tpu.memory_space<vmem>>, vector<1x8x256xf32>
      %52 = vector.shape_cast %51 : vector<1x8x256xf32> to vector<8x256xf32>
      %53 = vector.broadcast %43 : vector<8x1xf32> to vector<8x256xf32>
      %54 = arith.mulf %52, %53 : vector<8x256xf32>
      %55 = vector.broadcast %46 : vector<8x1xf32> to vector<8x256xf32>
      %56 = arith.addf %54, %55 : vector<8x256xf32>
      %57 = arith.index_cast %49 : i32 to index
      %c0_48 = arith.constant 0 : index
      %c0_49 = arith.constant 0 : index
      %58 = vector.load %arg0[%57, %c0_48, %c0_49] : memref<2x8x256xf32, #tpu.memory_space<vmem>>, vector<1x8x256xf32>
      %59 = vector.shape_cast %58 : vector<1x8x256xf32> to vector<8x256xf32>
      %60 = arith.addf %56, %59 : vector<8x256xf32>
      %cst_50 = arith.constant 0.000000e+00 : f32
      %61 = vector.broadcast %cst_50 : f32 to vector<8x256xf32>
      %62 = arith.maximumf %60, %61 : vector<8x256xf32>
      %63 = arith.index_cast %49 : i32 to index
      %c0_51 = arith.constant 0 : index
      %c0_52 = arith.constant 0 : index
      %64 = vector.load %arg7[%63, %c0_51, %c0_52] : memref<2x8x256xf32, #tpu.memory_space<vmem>>, vector<1x8x256xf32>
      %65 = vector.shape_cast %64 : vector<1x8x256xf32> to vector<8x256xf32>
      %66 = vector.shape_cast %62 : vector<8x256xf32> to vector<1x8x256xf32>
      tpu.vector_store %arg7[%63, %c0_51, %c0_52], %66 {strides = array<i32>} : memref<2x8x256xf32, #tpu.memory_space<vmem>>, vector<1x8x256xf32>,
    }
    %c2_i32_43 = arith.constant 2 : i32
    return
  }
}

</mosaic_0001>

<llo_original>
// kernel: basic_block_forward.1
$region0: #{basic_block_forward.1}
  #allocation0 [shape = 'u32[]', space=smem, size = 0x4, offset = 0x4, fixed_abs, tag = 'smem constant byte address 0x4 - core index']
  #allocation1 [shape = 'u32[144,128]{1,0:T(1,128)}', space=vmem, size = 0x12000, scoped, tag = 'internal scratch']
  #allocation2 [shape = 'f32[2,8,256]{2,1,0:T(8,128)}', space=vmem, size = 0x4000, scoped, tag = 'scratch operand']
  #allocation3 [shape = 'f32[8,1]{1,0:T(8,128)}', space=vmem, size = 0x1000, scoped, tag = 'scratch operand']
  #allocation4 [shape = 'f32[8,1]{1,0:T(8,128)}', space=vmem, size = 0x1000, scoped, tag = 'scratch operand']
  %s0 = inlined_call_operand.vmem [shape: f32[2,8,256], index: 0, kind: input, shape index: {}]
  %s1 = inlined_call_operand.vmem [shape: f32[8,8], index: 1, kind: input, shape index: {}]
  %s2 = inlined_call_operand.vmem [shape: f32[8,1], index: 2, kind: input, shape index: {}]
  %s3 = inlined_call_operand.vmem [shape: f32[8,1], index: 3, kind: input, shape index: {}]
  %s4 = inlined_call_operand.vmem [shape: f32[8,8], index: 4, kind: input, shape index: {}]
  %s5 = inlined_call_operand.vmem [shape: f32[8,1], index: 5, kind: input, shape index: {}]
  %s6 = inlined_call_operand.vmem [shape: f32[8,1], index: 6, kind: input, shape index: {}]
  %s7 = inlined_call_operand.hbm [shape: f32[2,8,256], index: 7, kind: output, shape index: {}]
  %s8 = sld [smem:[#allocation0]]
  $region59: #{basic_block_forward.1} parent=0
    _
  %s10 = ssub.s32 1, %s8
  %s11 = scalar_select 0, %s10, %s8
  $region1: #{basic_block_forward.1} parent=0
    #allocation5 [shape = 'u8[16384]{0}', space=vmem, size = 0x4000, scoped, tag = 'output window, operand 0, single buffered']
    #allocation6 [shape = 's32[1]{0}', space=sflag, size = 0x4, scoped, tag = 'scoped memory for basic_block_forward.1']
    %12 = vsyncpa [#allocation6], 0
    // Predicated region
    $region2: #{basic_block_forward.1} parent=1 // pred_check
      _
    $region3: #{basic_block_forward.1} parent=1 // pred_check_branch
      %14 = sbr.rel (0) target = $region5
    $region4: #{basic_block_forward.1} parent=1 // pred_region
      _
    $region5: #{basic_block_forward.1} parent=1 // pred_fallthru
      _
    // Predicated region
    $region6: #{basic_block_forward.1} parent=1 // pred_check
      _
    $region7: #{basic_block_forward.1} parent=1 // pred_check_branch
      %16 = sbr.rel (0) target = $region9
    $region8: #{basic_block_forward.1} parent=1 // pred_region
      _
    $region9: #{basic_block_forward.1} parent=1 // pred_fallthru
      _
    // Predicated region
    $region10: #{basic_block_forward.1} parent=1 // pred_check
      _
    $region11: #{basic_block_forward.1} parent=1 // pred_check_branch
      %18 = sbr.rel (0) target = $region13
    $region12: #{basic_block_forward.1} parent=1 // pred_region
      _
    $region13: #{basic_block_forward.1} parent=1 // pred_fallthru
      _
    // Predicated region
    $region14: #{basic_block_forward.1} parent=1 // pred_check
      _
    $region15: #{basic_block_forward.1} parent=1 // pred_check_branch
      %20 = sbr.rel (0) target = $region17
    $region16: #{basic_block_forward.1} parent=1 // pred_region
      _
    $region17: #{basic_block_forward.1} parent=1 // pred_fallthru
      _
    // Predicated region
    $region18: #{basic_block_forward.1} parent=1 // pred_check
      _
    $region19: #{basic_block_forward.1} parent=1 // pred_check_branch
      %22 = sbr.rel (0) target = $region21
    $region20: #{basic_block_forward.1} parent=1 // pred_region
      _
    $region21: #{basic_block_forward.1} parent=1 // pred_fallthru
      _
    // Predicated region
    $region22: #{basic_block_forward.1} parent=1 // pred_check
      _
    $region23: #{basic_block_forward.1} parent=1 // pred_check_branch
      %24 = sbr.rel (0) target = $region25
    $region24: #{basic_block_forward.1} parent=1 // pred_region
      _
    $region25: #{basic_block_forward.1} parent=1 // pred_fallthru
      _
    // Predicated region
    $region26: #{basic_block_forward.1} parent=1 // pred_check
      _
    $region27: #{basic_block_forward.1} parent=1 // pred_check_branch
      %26 = sbr.rel (0) target = $region29
    $region28: #{basic_block_forward.1} parent=1 // pred_region
      _
    $region29: #{basic_block_forward.1} parent=1 // pred_fallthru
      _
    %vm27 = vcmask 7168
    %28 = vst.msk [vmem:[#allocation3] sm:$0xff] %vm27, 0.0
    %29 = vst.msk [vmem:[#allocation4] sm:$0xff] %vm27, 0.0
    loop: start=0, step=1, limit=2
    $region30: #{basic_block_forward.1} parent=1 // loop_pre_header
      _
    $region31: #{basic_block_forward.1} parent=1 // loop_header
      %s31 = sphi 0, %s35
      %p32 = scmp.ge.s32.totalorder %s31, 2
    $region32: #{basic_block_forward.1} parent=1 // loop_header_branch
      %34 = sbr.rel (%p32) target = $region36
    $region33: #{basic_block_forward.1} parent=1 // loop_body
      %v36 = vld [vmem:[%s1] sm:$0xff]
      %s37 = smul.u32 %s31, 2
      %s38 = smul.addr %s37, 8
      %s39 = scalar_lea.vmem %s0, %s38
      %v40 = vld [vmem:[%s39] sm:$0xff]
      %v41 = vld [vmem:[%s39 + $0x8] sm:$0xff]
      %vm42 = vcmask 64512
      %v44 = vsel %vm42, %v36, 0
      %46 = vmatprep.subr.mxu0 %v41
      %47 = vmatpush1.msra.mxu0 %v40
      %48 = vmatprep.subr.mxu0 0.0
      %49 = vmatpush1.msra.mxu0 0.0
      %50 = vmatprep.subr.mxu0 0.0
      %51 = vmatpush1.msra.mxu0 0.0
      %52 = vmatprep.subr.mxu0 0.0
      %53 = vmatpush1.msra.mxu0 0.0
      %54 = vmatprep.subr.mxu0 0.0
      %55 = vmatpush1.msra.mxu0 0.0
      %56 = vmatprep.subr.mxu0 0.0
      %57 = vmatpush1.msra.mxu0 0.0
      %58 = vmatprep.subr.mxu0 0.0
      %59 = vmatpush1.msra.mxu0 0.0
      %60 = vmatprep.subr.mxu0 0.0
      %61 = vmatpush1.msra.mxu0 0.0
      %62 = vmatprep.subr.mxu0 0.0
      %63 = vmatpush1.msra.mxu0 0.0
      %64 = vmatprep.subr.mxu0 0.0
      %65 = vmatpush1.msra.mxu0 0.0
      %66 = vmatprep.subr.mxu0 0.0
      %67 = vmatpush1.msra.mxu0 0.0
      %68 = vmatprep.subr.mxu0 0.0
      %69 = vmatpush1.msra.mxu0 0.0
      %70 = vmatprep.subr.mxu0 0.0
      %71 = vmatpush1.msra.mxu0 0.0
      %72 = vmatprep.subr.mxu0 0.0
      %73 = vmatpush1.msra.mxu0 0.0
      %74 = vmatprep.subr.mxu0 0.0
      %75 = vmatpush1.msra.mxu0 0.0
      %76 = vmatprep.subr.mxu0 0.0
      %77 = vmatpush1.msra.mxu0 0.0
      %78 = vmatprep.subr.mxu0 0.0
      %79 = vmatpush1.msra.mxu0 0.0
      %80 = vmatprep.subr.mxu0 0.0
      %81 = vmatpush1.msra.mxu0 0.0
      %82 = vmatprep.subr.mxu0 0.0
      %83 = vmatpush1.msra.mxu0 0.0
      %84 = vmatprep.subr.mxu0 0.0
      %85 = vmatpush1.msra.mxu0 0.0
      %86 = vmatprep.subr.mxu0 0.0
      %87 = vmatpush1.msra.mxu0 0.0
      %88 = vmatprep.subr.mxu0 0.0
      %89 = vmatpush1.msra.mxu0 0.0
      %90 = vmatprep.subr.mxu0 0.0
      %91 = vmatpush1.msra.mxu0 0.0
      %92 = vmatprep.subr.mxu0 0.0
      %93 = vmatpush1.msra.mxu0 0.0
      %94 = vmatprep.subr.mxu0 0.0
      %95 = vmatpush1.msra.mxu0 0.0
      %96 = vmatprep.subr.mxu0 0.0
      %97 = vmatpush1.msra.mxu0 0.0
      %98 = vmatprep.subr.mxu0 0.0
      %99 = vmatpush1.msra.mxu0 0.0
      %100 = vmatprep.subr.mxu0 0.0
      %101 = vmatpush1.msra.mxu0 0.0
      %102 = vmatprep.subr.mxu0 0.0
      %103 = vmatpush1.msra.mxu0 0.0
      %104 = vmatprep.subr.mxu0 0.0
      %105 = vmatpush1.msra.mxu0 0.0
      %106 = vmatprep.subr.mxu0 0.0
      %107 = vmatpush1.msra.mxu0 0.0
      %108 = vmatprep.subr.mxu0 0.0
      %109 = vmatpush1.msra.mxu0 0.0
      %110 = vmatprep.mubr.f32.mxu0 0.0
      %111 = vmatmul.mubr.f32.gmra.mrb[0].mxu0 %v44
      %v112 = vpop.f32.mrb[0].mxu0
      %v113 = vadd.f32 0.0, %v112
      %v114 = vpop.f32.mrb[0].mxu0
      %v115 = vadd.f32 0.0, %v114
      %116 = vdwg.mxu0
      %s117 = smul.addr %s37, 8
      %s118 = scalar_lea.vmem [#allocation2], %s117
      %119 = vst [vmem:[%s118] sm:$0xff] %v113
      %120 = vst [vmem:[%s118 + $0x8] sm:$0xff] %v115
      %v121 = vld [vmem:[#allocation3] sm:$0xff]
      %122 = vmatprep.subr.mxu0 0.0
      %123 = vmatpush1.msra.mxu0 1.0
      %124 = vmatprep.subr.mxu0 0.0
      %125 = vmatpush1.msra.mxu0 1.0
      %126 = vmatprep.subr.mxu0 0.0
      %127 = vmatpush1.msra.mxu0 1.0
      %128 = vmatprep.subr.mxu0 0.0
      %129 = vmatpush1.msra.mxu0 1.0
      %130 = vmatprep.subr.mxu0 0.0
      %131 = vmatpush1.msra.mxu0 1.0
      %132 = vmatprep.subr.mxu0 0.0
      %133 = vmatpush1.msra.mxu0 1.0
      %134 = vmatprep.subr.mxu0 0.0
      %135 = vmatpush1.msra.mxu0 1.0
      %136 = vmatprep.subr.mxu0 0.0
      %137 = vmatpush1.msra.mxu0 1.0
      %138 = vmatprep.subr.mxu0 0.0
      %139 = vmatpush1.msra.mxu0 1.0
      %140 = vmatprep.subr.mxu0 0.0
      %141 = vmatpush1.msra.mxu0 1.0
      %142 = vmatprep.subr.mxu0 0.0
      %143 = vmatpush1.msra.mxu0 1.0
      %144 = vmatprep.subr.mxu0 0.0
      %145 = vmatpush1.msra.mxu0 1.0
      %146 = vmatprep.subr.mxu0 0.0
      %147 = vmatpush1.msra.mxu0 1.0
      %148 = vmatprep.subr.mxu0 0.0
      %149 = vmatpush1.msra.mxu0 1.0
      %150 = vmatprep.subr.mxu0 0.0
      %151 = vmatpush1.msra.mxu0 1.0
      %152 = vmatprep.subr.mxu0 0.0
      %153 = vmatpush1.msra.mxu0 1.0
      %154 = vmatprep.subr.mxu0 0.0
      %155 = vmatpush1.msra.mxu0 1.0
      %156 = vmatprep.subr.mxu0 0.0
      %157 = vmatpush1.msra.mxu0 1.0
      %158 = vmatprep.subr.mxu0 0.0
      %159 = vmatpush1.msra.mxu0 1.0
      %160 = vmatprep.subr.mxu0 0.0
      %161 = vmatpush1.msra.mxu0 1.0
      %162 = vmatprep.subr.mxu0 0.0
      %163 = vmatpush1.msra.mxu0 1.0
      %164 = vmatprep.subr.mxu0 0.0
      %165 = vmatpush1.msra.mxu0 1.0
      %166 = vmatprep.subr.mxu0 0.0
      %167 = vmatpush1.msra.mxu0 1.0
      %168 = vmatprep.subr.mxu0 0.0
      %169 = vmatpush1.msra.mxu0 1.0
      %170 = vmatprep.subr.mxu0 0.0
      %171 = vmatpush1.msra.mxu0 1.0
      %172 = vmatprep.subr.mxu0 0.0
      %173 = vmatpush1.msra.mxu0 1.0
      %174 = vmatprep.subr.mxu0 0.0
      %175 = vmatpush1.msra.mxu0 1.0
      %176 = vmatprep.subr.mxu0 0.0
      %177 = vmatpush1.msra.mxu0 1.0
      %178 = vmatprep.subr.mxu0 0.0
      %179 = vmatpush1.msra.mxu0 1.0
      %180 = vmatprep.subr.mxu0 0.0
      %181 = vmatpush1.msra.mxu0 1.0
      %182 = vmatprep.subr.mxu0 0.0
      %183 = vmatpush1.msra.mxu0 1.0
      %184 = vmatprep.subr.mxu0 0.0
      %185 = vmatpush1.msra.mxu0 1.0
      %186 = vmatprep.mubr.f32.mxu0 %v115
      %187 = vmatmul.mubr.f32.gmra.mrb[0].mxu0 %v113
      %v188 = vpop.f32.mrb[0].mxu0
      %v189 = vadd.f32 0.0, %v188
      %v190 = vpop.f32.mrb[0].mxu0
      %191 = vdwg.mxu0
      %v192 = vadd.f32 %v121, %v189
      %193 = vst.msk [vmem:[#allocation3] sm:$0xff] %vm27, %v192
      %v194 = vld [vmem:[#allocation4] sm:$0xff]
      %v195 = vmul.f32 %v113, %v113
      %v196 = vmul.f32 %v115, %v115
      %197 = vmatprep.subr.mxu0 0.0
      %198 = vmatpush1.msra.mxu0 1.0
      %199 = vmatprep.subr.mxu0 0.0
      %200 = vmatpush1.msra.mxu0 1.0
      %201 = vmatprep.subr.mxu0 0.0
      %202 = vmatpush1.msra.mxu0 1.0
      %203 = vmatprep.subr.mxu0 0.0
      %204 = vmatpush1.msra.mxu0 1.0
      %205 = vmatprep.subr.mxu0 0.0
      %206 = vmatpush1.msra.mxu0 1.0
      %207 = vmatprep.subr.mxu0 0.0
      %208 = vmatpush1.msra.mxu0 1.0
      %209 = vmatprep.subr.mxu0 0.0
      %210 = vmatpush1.msra.mxu0 1.0
      %211 = vmatprep.subr.mxu0 0.0
      %212 = vmatpush1.msra.mxu0 1.0
      %213 = vmatprep.subr.mxu0 0.0
      %214 = vmatpush1.msra.mxu0 1.0
      %215 = vmatprep.subr.mxu0 0.0
      %216 = vmatpush1.msra.mxu0 1.0
      %217 = vmatprep.subr.mxu0 0.0
      %218 = vmatpush1.msra.mxu0 1.0
      %219 = vmatprep.subr.mxu0 0.0
      %220 = vmatpush1.msra.mxu0 1.0
      %221 = vmatprep.subr.mxu0 0.0
      %222 = vmatpush1.msra.mxu0 1.0
      %223 = vmatprep.subr.mxu0 0.0
      %224 = vmatpush1.msra.mxu0 1.0
      %225 = vmatprep.subr.mxu0 0.0
      %226 = vmatpush1.msra.mxu0 1.0
      %227 = vmatprep.subr.mxu0 0.0
      %228 = vmatpush1.msra.mxu0 1.0
      %229 = vmatprep.subr.mxu0 0.0
      %230 = vmatpush1.msra.mxu0 1.0
      %231 = vmatprep.subr.mxu0 0.0
      %232 = vmatpush1.msra.mxu0 1.0
      %233 = vmatprep.subr.mxu0 0.0
      %234 = vmatpush1.msra.mxu0 1.0
      %235 = vmatprep.subr.mxu0 0.0
      %236 = vmatpush1.msra.mxu0 1.0
      %237 = vmatprep.subr.mxu0 0.0
      %238 = vmatpush1.msra.mxu0 1.0
      %239 = vmatprep.subr.mxu0 0.0
      %240 = vmatpush1.msra.mxu0 1.0
      %241 = vmatprep.subr.mxu0 0.0
      %242 = vmatpush1.msra.mxu0 1.0
      %243 = vmatprep.subr.mxu0 0.0
      %244 = vmatpush1.msra.mxu0 1.0
      %245 = vmatprep.subr.mxu0 0.0
      %246 = vmatpush1.msra.mxu0 1.0
      %247 = vmatprep.subr.mxu0 0.0
      %248 = vmatpush1.msra.mxu0 1.0
      %249 = vmatprep.subr.mxu0 0.0
      %250 = vmatpush1.msra.mxu0 1.0
      %251 = vmatprep.subr.mxu0 0.0
      %252 = vmatpush1.msra.mxu0 1.0
      %253 = vmatprep.subr.mxu0 0.0
      %254 = vmatpush1.msra.mxu0 1.0
      %255 = vmatprep.subr.mxu0 0.0
      %256 = vmatpush1.msra.mxu0 1.0
      %257 = vmatprep.subr.mxu0 0.0
      %258 = vmatpush1.msra.mxu0 1.0
      %259 = vmatprep.subr.mxu0 0.0
      %260 = vmatpush1.msra.mxu0 1.0
      %261 = vmatprep.mubr.f32.mxu0 %v196
      %262 = vmatmul.mubr.f32.gmra.mrb[0].mxu0 %v195
      %v263 = vpop.f32.mrb[0].mxu0
      %v264 = vadd.f32 0.0, %v263
      %v265 = vpop.f32.mrb[0].mxu0
      %266 = vdwg.mxu0
      %v267 = vadd.f32 %v194, %v264
      %268 = vst.msk [vmem:[#allocation4] sm:$0xff] %vm27, %v267
    $region34: #{basic_block_forward.1} parent=1 // loop_footer
      %s35 = sadd.s32 1, %s31
    $region35: #{basic_block_forward.1} parent=1 // loop_footer_branch
      %30 = sbr.rel target = $region31
    $region36: #{basic_block_forward.1} parent=1 // loop_exit
      _
    %v269 = vld [vmem:[#allocation3] sm:$0xff]
    %v270 = vmul.f32 %v269, 0.001953125
    %v271 = vld [vmem:[#allocation4] sm:$0xff]
    %v272 = vmul.f32 %v271, 0.001953125
    %v273 = vmul.f32 %v270, %v270
    %v274 = vsub.f32 %v272, %v273
    %v275 = vmax.f32 %v274, 0.0
    %v276 = vld [vmem:[%s2] sm:$0xff]
    %v277 = vadd.f32 %v275, 1e-05
    %v278 = vrsqrt.pop %v277
    %v279 = vmul.f32 %v276, %v278
    %v280 = vld [vmem:[%s3] sm:$0xff]
    %v281 = vmul.f32 %v270, %v279
    %v282 = vsub.f32 %v280, %v281
    %283 = vst.msk [vmem:[#allocation3] sm:$0xff] %vm27, 0.0
    %284 = vst.msk [vmem:[#allocation4] sm:$0xff] %vm27, 0.0
    loop: start=0, step=1, limit=2
    $region37: #{basic_block_forward.1} parent=1 // loop_pre_header
      _
    $region38: #{basic_block_forward.1} parent=1 // loop_header
      %s286 = sphi 0, %s290
      %p287 = scmp.ge.s32.totalorder %s286, 2
    $region39: #{basic_block_forward.1} parent=1 // loop_header_branch
      %289 = sbr.rel (%p287) target = $region43
    $region40: #{basic_block_forward.1} parent=1 // loop_body
      %s291 = smul.u32 %s286, 2
      %s292 = smul.addr %s291, 8
      %s293 = scalar_lea.vmem [#allocation2], %s292
      %v294 = vld [vmem:[%s293] sm:$0xff]
      %v295 = vld [vmem:[%s293 + $0x8] sm:$0xff]
      %297 = vset.pattern.permute.xlu0 0
      %298 = vperm.xlu0 %297, %v279
      %v299 = vpop.permute.xlu0 %298
      %v301 = vmul.f32 %v294, %v299
      %v302 = vmul.f32 %v295, %v299
      %304 = vset.pattern.permute.xlu0 0
      %305 = vperm.xlu0 %304, %v282
      %v306 = vpop.permute.xlu0 %305
      %v308 = vadd.f32 %v301, %v306
      %v309 = vadd.f32 %v302, %v306
      %v310 = vmax.f32 %v308, 0.0
      %v311 = vmax.f32 %v309, 0.0
      %v312 = vld [vmem:[%s4] sm:$0xff]
      %vm313 = vcmask 64512
      %v315 = vsel %vm313, %v312, 0
      %317 = vmatprep.subr.mxu0 %v311
      %318 = vmatpush1.msra.mxu0 %v310
      %319 = vmatprep.subr.mxu0 0.0
      %320 = vmatpush1.msra.mxu0 0.0
      %321 = vmatprep.subr.mxu0 0.0
      %322 = vmatpush1.msra.mxu0 0.0
      %323 = vmatprep.subr.mxu0 0.0
      %324 = vmatpush1.msra.mxu0 0.0
      %325 = vmatprep.subr.mxu0 0.0
      %326 = vmatpush1.msra.mxu0 0.0
      %327 = vmatprep.subr.mxu0 0.0
      %328 = vmatpush1.msra.mxu0 0.0
      %329 = vmatprep.subr.mxu0 0.0
      %330 = vmatpush1.msra.mxu0 0.0
      %331 = vmatprep.subr.mxu0 0.0
      %332 = vmatpush1.msra.mxu0 0.0
      %333 = vmatprep.subr.mxu0 0.0
      %334 = vmatpush1.msra.mxu0 0.0
      %335 = vmatprep.subr.mxu0 0.0
      %336 = vmatpush1.msra.mxu0 0.0
      %337 = vmatprep.subr.mxu0 0.0
      %338 = vmatpush1.msra.mxu0 0.0
      %339 = vmatprep.subr.mxu0 0.0
      %340 = vmatpush1.msra.mxu0 0.0
      %341 = vmatprep.subr.mxu0 0.0
      %342 = vmatpush1.msra.mxu0 0.0
      %343 = vmatprep.subr.mxu0 0.0
      %344 = vmatpush1.msra.mxu0 0.0
      %345 = vmatprep.subr.mxu0 0.0
      %346 = vmatpush1.msra.mxu0 0.0
      %347 = vmatprep.subr.mxu0 0.0
      %348 = vmatpush1.msra.mxu0 0.0
      %349 = vmatprep.subr.mxu0 0.0
      %350 = vmatpush1.msra.mxu0 0.0
      %351 = vmatprep.subr.mxu0 0.0
      %352 = vmatpush1.msra.mxu0 0.0
      %353 = vmatprep.subr.mxu0 0.0
      %354 = vmatpush1.msra.mxu0 0.0
      %355 = vmatprep.subr.mxu0 0.0
      %356 = vmatpush1.msra.mxu0 0.0
      %357 = vmatprep.subr.mxu0 0.0
      %358 = vmatpush1.msra.mxu0 0.0
      %359 = vmatprep.subr.mxu0 0.0
      %360 = vmatpush1.msra.mxu0 0.0
      %361 = vmatprep.subr.mxu0 0.0
      %362 = vmatpush1.msra.mxu0 0.0
      %363 = vmatprep.subr.mxu0 0.0
      %364 = vmatpush1.msra.mxu0 0.0
      %365 = vmatprep.subr.mxu0 0.0
      %366 = vmatpush1.msra.mxu0 0.0
      %367 = vmatprep.subr.mxu0 0.0
      %368 = vmatpush1.msra.mxu0 0.0
      %369 = vmatprep.subr.mxu0 0.0
      %370 = vmatpush1.msra.mxu0 0.0
      %371 = vmatprep.subr.mxu0 0.0
      %372 = vmatpush1.msra.mxu0 0.0
      %373 = vmatprep.subr.mxu0 0.0
      %374 = vmatpush1.msra.mxu0 0.0
      %375 = vmatprep.subr.mxu0 0.0
      %376 = vmatpush1.msra.mxu0 0.0
      %377 = vmatprep.subr.mxu0 0.0
      %378 = vmatpush1.msra.mxu0 0.0
      %379 = vmatprep.subr.mxu0 0.0
      %380 = vmatpush1.msra.mxu0 0.0
      %381 = vmatprep.mubr.f32.mxu0 0.0
      %382 = vmatmul.mubr.f32.gmra.mrb[0].mxu0 %v315
      %v383 = vpop.f32.mrb[0].mxu0
      %v384 = vadd.f32 0.0, %v383
      %v385 = vpop.f32.mrb[0].mxu0
      %v386 = vadd.f32 0.0, %v385
      %387 = vdwg.mxu0
      %s388 = smul.addr %s291, 8
      %s389 = scalar_lea.vmem [#allocation5], %s388
      %390 = vst [vmem:[%s389] sm:$0xff] %v384
      %391 = vst [vmem:[%s389 + $0x8] sm:$0xff] %v386
      %v392 = vld [vmem:[#allocation3] sm:$0xff]
      %393 = vmatprep.subr.mxu0 0.0
      %394 = vmatpush1.msra.mxu0 1.0
      %395 = vmatprep.subr.mxu0 0.0
      %396 = vmatpush1.msra.mxu0 1.0
      %397 = vmatprep.subr.mxu0 0.0
      %398 = vmatpush1.msra.mxu0 1.0
      %399 = vmatprep.subr.mxu0 0.0
      %400 = vmatpush1.msra.mxu0 1.0
      %401 = vmatprep.subr.mxu0 0.0
      %402 = vmatpush1.msra.mxu0 1.0
      %403 = vmatprep.subr.mxu0 0.0
      %404 = vmatpush1.msra.mxu0 1.0
      %405 = vmatprep.subr.mxu0 0.0
      %406 = vmatpush1.msra.mxu0 1.0
      %407 = vmatprep.subr.mxu0 0.0
      %408 = vmatpush1.msra.mxu0 1.0
      %409 = vmatprep.subr.mxu0 0.0
      %410 = vmatpush1.msra.mxu0 1.0
      %411 = vmatprep.subr.mxu0 0.0
      %412 = vmatpush1.msra.mxu0 1.0
      %413 = vmatprep.subr.mxu0 0.0
      %414 = vmatpush1.msra.mxu0 1.0
      %415 = vmatprep.subr.mxu0 0.0
      %416 = vmatpush1.msra.mxu0 1.0
      %417 = vmatprep.subr.mxu0 0.0
      %418 = vmatpush1.msra.mxu0 1.0
      %419 = vmatprep.subr.mxu0 0.0
      %420 = vmatpush1.msra.mxu0 1.0
      %421 = vmatprep.subr.mxu0 0.0
      %422 = vmatpush1.msra.mxu0 1.0
      %423 = vmatprep.subr.mxu0 0.0
      %424 = vmatpush1.msra.mxu0 1.0
      %425 = vmatprep.subr.mxu0 0.0
      %426 = vmatpush1.msra.mxu0 1.0
      %427 = vmatprep.subr.mxu0 0.0
      %428 = vmatpush1.msra.mxu0 1.0
      %429 = vmatprep.subr.mxu0 0.0
      %430 = vmatpush1.msra.mxu0 1.0
      %431 = vmatprep.subr.mxu0 0.0
      %432 = vmatpush1.msra.mxu0 1.0
      %433 = vmatprep.subr.mxu0 0.0
      %434 = vmatpush1.msra.mxu0 1.0
      %435 = vmatprep.subr.mxu0 0.0
      %436 = vmatpush1.msra.mxu0 1.0
      %437 = vmatprep.subr.mxu0 0.0
      %438 = vmatpush1.msra.mxu0 1.0
      %439 = vmatprep.subr.mxu0 0.0
      %440 = vmatpush1.msra.mxu0 1.0
      %441 = vmatprep.subr.mxu0 0.0
      %442 = vmatpush1.msra.mxu0 1.0
      %443 = vmatprep.subr.mxu0 0.0
      %444 = vmatpush1.msra.mxu0 1.0
      %445 = vmatprep.subr.mxu0 0.0
      %446 = vmatpush1.msra.mxu0 1.0
      %447 = vmatprep.subr.mxu0 0.0
      %448 = vmatpush1.msra.mxu0 1.0
      %449 = vmatprep.subr.mxu0 0.0
      %450 = vmatpush1.msra.mxu0 1.0
      %451 = vmatprep.subr.mxu0 0.0
      %452 = vmatpush1.msra.mxu0 1.0
      %453 = vmatprep.subr.mxu0 0.0
      %454 = vmatpush1.msra.mxu0 1.0
      %455 = vmatprep.subr.mxu0 0.0
      %456 = vmatpush1.msra.mxu0 1.0
      %457 = vmatprep.mubr.f32.mxu0 %v386
      %458 = vmatmul.mubr.f32.gmra.mrb[0].mxu0 %v384
      %v459 = vpop.f32.mrb[0].mxu0
      %v460 = vadd.f32 0.0, %v459
      %v461 = vpop.f32.mrb[0].mxu0
      %462 = vdwg.mxu0
      %v463 = vadd.f32 %v392, %v460
      %464 = vst.msk [vmem:[#allocation3] sm:$0xff] %vm27, %v463
      %v465 = vld [vmem:[#allocation4] sm:$0xff]
      %v466 = vmul.f32 %v384, %v384
      %v467 = vmul.f32 %v386, %v386
      %468 = vmatprep.subr.mxu0 0.0
      %469 = vmatpush1.msra.mxu0 1.0
      %470 = vmatprep.subr.mxu0 0.0
      %471 = vmatpush1.msra.mxu0 1.0
      %472 = vmatprep.subr.mxu0 0.0
      %473 = vmatpush1.msra.mxu0 1.0
      %474 = vmatprep.subr.mxu0 0.0
      %475 = vmatpush1.msra.mxu0 1.0
      %476 = vmatprep.subr.mxu0 0.0
      %477 = vmatpush1.msra.mxu0 1.0
      %478 = vmatprep.subr.mxu0 0.0
      %479 = vmatpush1.msra.mxu0 1.0
      %480 = vmatprep.subr.mxu0 0.0
      %481 = vmatpush1.msra.mxu0 1.0
      %482 = vmatprep.subr.mxu0 0.0
      %483 = vmatpush1.msra.mxu0 1.0
      %484 = vmatprep.subr.mxu0 0.0
      %485 = vmatpush1.msra.mxu0 1.0
      %486 = vmatprep.subr.mxu0 0.0
      %487 = vmatpush1.msra.mxu0 1.0
      %488 = vmatprep.subr.mxu0 0.0
      %489 = vmatpush1.msra.mxu0 1.0
      %490 = vmatprep.subr.mxu0 0.0
      %491 = vmatpush1.msra.mxu0 1.0
      %492 = vmatprep.subr.mxu0 0.0
      %493 = vmatpush1.msra.mxu0 1.0
      %494 = vmatprep.subr.mxu0 0.0
      %495 = vmatpush1.msra.mxu0 1.0
      %496 = vmatprep.subr.mxu0 0.0
      %497 = vmatpush1.msra.mxu0 1.0
      %498 = vmatprep.subr.mxu0 0.0
      %499 = vmatpush1.msra.mxu0 1.0
      %500 = vmatprep.subr.mxu0 0.0
      %501 = vmatpush1.msra.mxu0 1.0
      %502 = vmatprep.subr.mxu0 0.0
      %503 = vmatpush1.msra.mxu0 1.0
      %504 = vmatprep.subr.mxu0 0.0
      %505 = vmatpush1.msra.mxu0 1.0
      %506 = vmatprep.subr.mxu0 0.0
      %507 = vmatpush1.msra.mxu0 1.0
      %508 = vmatprep.subr.mxu0 0.0
      %509 = vmatpush1.msra.mxu0 1.0
      %510 = vmatprep.subr.mxu0 0.0
      %511 = vmatpush1.msra.mxu0 1.0
      %512 = vmatprep.subr.mxu0 0.0
      %513 = vmatpush1.msra.mxu0 1.0
      %514 = vmatprep.subr.mxu0 0.0
      %515 = vmatpush1.msra.mxu0 1.0
      %516 = vmatprep.subr.mxu0 0.0
      %517 = vmatpush1.msra.mxu0 1.0
      %518 = vmatprep.subr.mxu0 0.0
      %519 = vmatpush1.msra.mxu0 1.0
      %520 = vmatprep.subr.mxu0 0.0
      %521 = vmatpush1.msra.mxu0 1.0
      %522 = vmatprep.subr.mxu0 0.0
      %523 = vmatpush1.msra.mxu0 1.0
      %524 = vmatprep.subr.mxu0 0.0
      %525 = vmatpush1.msra.mxu0 1.0
      %526 = vmatprep.subr.mxu0 0.0
      %527 = vmatpush1.msra.mxu0 1.0
      %528 = vmatprep.subr.mxu0 0.0
      %529 = vmatpush1.msra.mxu0 1.0
      %530 = vmatprep.subr.mxu0 0.0
      %531 = vmatpush1.msra.mxu0 1.0
      %532 = vmatprep.mubr.f32.mxu0 %v467
      %533 = vmatmul.mubr.f32.gmra.mrb[0].mxu0 %v466
      %v534 = vpop.f32.mrb[0].mxu0
      %v535 = vadd.f32 0.0, %v534
      %v536 = vpop.f32.mrb[0].mxu0
      %537 = vdwg.mxu0
      %v538 = vadd.f32 %v465, %v535
      %539 = vst.msk [vmem:[#allocation4] sm:$0xff] %vm27, %v538
    $region41: #{basic_block_forward.1} parent=1 // loop_footer
      %s290 = sadd.s32 1, %s286
    $region42: #{basic_block_forward.1} parent=1 // loop_footer_branch
      %285 = sbr.rel target = $region38
    $region43: #{basic_block_forward.1} parent=1 // loop_exit
      _
    %v540 = vld [vmem:[#allocation3] sm:$0xff]
    %v541 = vmul.f32 %v540, 0.001953125
    %v542 = vld [vmem:[#allocation4] sm:$0xff]
    %v543 = vmul.f32 %v542, 0.001953125
    %v544 = vmul.f32 %v541, %v541
    %v545 = vsub.f32 %v543, %v544
    %v546 = vmax.f32 %v545, 0.0
    %v547 = vld [vmem:[%s5] sm:$0xff]
    %v548 = vadd.f32 %v546, 1e-05
    %v549 = vrsqrt.pop %v548
    %v550 = vmul.f32 %v547, %v549
    %v551 = vld [vmem:[%s6] sm:$0xff]
    %v552 = vmul.f32 %v541, %v550
    %v553 = vsub.f32 %v551, %v552
    loop: start=0, step=1, limit=2
    $region44: #{basic_block_forward.1} parent=1 // loop_pre_header
      _
    $region45: #{basic_block_forward.1} parent=1 // loop_header
      %s555 = sphi 0, %s559
      %p556 = scmp.ge.s32.totalorder %s555, 2
    $region46: #{basic_block_forward.1} parent=1 // loop_header_branch
      %558 = sbr.rel (%p556) target = $region50
    $region47: #{basic_block_forward.1} parent=1 // loop_body
      %s560 = smul.u32 %s555, 2
      %s561 = smul.addr %s560, 8
      %s562 = scalar_lea.vmem [#allocation5], %s561
      %v563 = vld [vmem:[%s562] sm:$0xff]
      %v564 = vld [vmem:[%s562 + $0x8] sm:$0xff]
      %566 = vset.pattern.permute.xlu0 0
      %567 = vperm.xlu0 %566, %v550
      %v568 = vpop.permute.xlu0 %567
      %v570 = vmul.f32 %v563, %v568
      %v571 = vmul.f32 %v564, %v568
      %573 = vset.pattern.permute.xlu0 0
      %574 = vperm.xlu0 %573, %v553
      %v575 = vpop.permute.xlu0 %574
      %v577 = vadd.f32 %v570, %v575
      %v578 = vadd.f32 %v571, %v575
      %s579 = smul.addr %s560, 8
      %s580 = scalar_lea.vmem %s0, %s579
      %v581 = vld [vmem:[%s580] sm:$0xff]
      %v582 = vld [vmem:[%s580 + $0x8] sm:$0xff]
      %v583 = vadd.f32 %v577, %v581
      %v584 = vadd.f32 %v578, %v582
      %v585 = vmax.f32 %v583, 0.0
      %v586 = vmax.f32 %v584, 0.0
      %587 = vst [vmem:[%s562] sm:$0xff] %v585
      %588 = vst [vmem:[%s562 + $0x8] sm:$0xff] %v586
    $region48: #{basic_block_forward.1} parent=1 // loop_footer
      %s559 = sadd.s32 1, %s555
    $region49: #{basic_block_forward.1} parent=1 // loop_footer_branch
      %554 = sbr.rel target = $region45
    $region50: #{basic_block_forward.1} parent=1 // loop_exit
      _
    // Predicated region
    $region51: #{basic_block_forward.1} parent=1 // pred_check
      _
    $region52: #{basic_block_forward.1} parent=1 // pred_check_branch
      %590 = sbr.rel (0) target = $region54
    $region53: #{basic_block_forward.1} parent=1 // pred_region
      %s592 = ssub.s32 512, 512
      %593 = vsyncadd [#allocation6], %s592
      %s594 = sshll.u32 [#allocation5], 4
      %s595 = int_to_ptr.vmem [resolvable:$true] %s594
      %600 = dma.vmem_to_hbm [thread:$0]  %s595, 512, %s7, [#allocation6], 256, 256, 16
    $region54: #{basic_block_forward.1} parent=1 // pred_fallthru
      _
    // Predicated region
    $region55: #{basic_block_forward.1} parent=1 // pred_check
      _
    $region56: #{basic_block_forward.1} parent=1 // pred_check_branch
      %602 = sbr.rel (0) target = $region58
    $region57: #{basic_block_forward.1} parent=1 // pred_region
      %603 = dma.done [#allocation6], 512
    $region58: #{basic_block_forward.1} parent=1 // pred_fallthru
      _
    %604 = vsyncpa [#allocation6], 1

</llo_original>
